<compile_context>
chip_gen: v7x
topology: tpu7x:2x2x1
jax: 0.10.0
libtpu: 0.0.40
codegen_flags: <defaults>
</compile_context>

<pallas_src>
import jax
import jax.numpy as jnp
from jax.experimental import pallas as pl
from jax.experimental.pallas import tpu as pltpu


def attention_light_kernel(q_ref, nf_ref, adj_ref, gamma_ref, beta_ref,
                           o_ref, acc_ref):
    k = pl.program_id(2)
    nk = pl.num_programs(2)

    @pl.when(k == 0)
    def _():
        acc_ref[...] = jnp.zeros_like(acc_ref)

    # Blocks: q/nf are (TK, D+1) for the k-th node slab, adj is (TR, TK).
    q = q_ref[0].astype(jnp.float32)
    nf = nf_ref[0].astype(jnp.float32)
    adj = adj_ref[0].astype(jnp.float32)   # bf16 -> f32 upcast on-chip (exact for {0,1})

    dp = nf.shape[-1]                      # D + 1 (padded width)
    # cor is exact: query's padded last column is 0, so it contributes nothing.
    cor = jnp.abs(jnp.sum(q * nf, axis=-1, keepdims=True))            # (TK, 1)
    # wei_aug[:, :D] = cor * nodefea ; wei_aug[:, D] = 1  (degree column)
    col = jax.lax.broadcasted_iota(jnp.int32, nf.shape, 1)
    wei_aug = jnp.where(col == dp - 1, 1.0, cor * nf)                  # (TK, D+1)

    # One MXU matmul accumulates both aggregated features and row degrees.
    acc_ref[...] += jnp.dot(adj, wei_aug, preferred_element_type=jnp.float32)

    @pl.when(k == nk - 1)
    def _():
        acc = acc_ref[...]                                             # (TR, D+1)
        d = o_ref.shape[-1]
        fea = acc[:, :d]                                               # (TR, D)
        deg = acc[:, d:d + 1]                                          # (TR, 1)

        # LeakyReLU(0.01) + degree normalization.
        fea = jnp.where(fea > 0, fea, 0.01 * fea)
        x = fea / (deg + 1e-8)

        # LayerNorm over emb_dim (biased variance, eps=1e-5, affine).
        mean = jnp.mean(x, axis=-1, keepdims=True)
        var = jnp.mean((x - mean) * (x - mean), axis=-1, keepdims=True)
        y = (x - mean) * jax.lax.rsqrt(var + 1e-5)
        o_ref[0] = (y * gamma_ref[...] + beta_ref[...]).astype(o_ref.dtype)


def _largest_tile(n, candidates):
    for c in candidates:
        if n % c == 0:
            return c
    return n


def attention_light(query, nodefea, input_adj, gamma, beta, *,
                    cast_adj_bf16=True):
    B, N, D = query.shape
    assert nodefea.shape == (B, N, D)
    assert input_adj.shape == (B, N, N)
    gamma = jnp.asarray(gamma, jnp.float32).reshape(1, D)
    beta = jnp.asarray(beta, jnp.float32).reshape(1, D)

    # Narrow the dominant HBM stream. Exact for binary / small-integer
    # adjacencies; pass cast_adj_bf16=False for weighted graphs.
    adj = input_adj.astype(jnp.bfloat16) if cast_adj_bf16 else input_adj

    # Pad features so the degree sum rides along in the MXU matmul.
    Dp = D + 1
    q_aug = jnp.concatenate(
        [query, jnp.zeros((B, N, 1), query.dtype)], axis=-1)
    nf_aug = jnp.concatenate(
        [nodefea, jnp.ones((B, N, 1), nodefea.dtype)], axis=-1)

    # Tile sizes: TR (output rows) multiple of 8, TK (contraction / adj lanes)
    # multiple of 128; fall back to full-N blocks for small / odd N.
    TR = _largest_tile(N, (256, 128, 64, 32, 16, 8))
    TK = _largest_tile(N, (512, 256, 128))
    nR, nK = N // TR, N // TK

    return pl.pallas_call(
        attention_light_kernel,
        out_shape=jax.ShapeDtypeStruct((B, N, D), jnp.float32),
        grid_spec=pltpu.PrefetchScalarGridSpec(
            num_scalar_prefetch=0,
            grid=(B, nR, nK),
            in_specs=[
                pl.BlockSpec((1, TK, Dp), lambda b, r, k: (b, k, 0)),  # query (padded)
                pl.BlockSpec((1, TK, Dp), lambda b, r, k: (b, k, 0)),  # nodefea (padded)
                pl.BlockSpec((1, TR, TK), lambda b, r, k: (b, r, k)),  # adjacency (bf16)
                pl.BlockSpec((1, D), lambda b, r, k: (0, 0)),          # gamma
                pl.BlockSpec((1, D), lambda b, r, k: (0, 0)),          # beta
            ],
            out_specs=pl.BlockSpec((1, TR, D), lambda b, r, k: (b, r, 0)),
            scratch_shapes=[pltpu.VMEM((TR, Dp), jnp.float32)],
        ),
        compiler_params=pltpu.CompilerParams(
            dimension_semantics=("parallel", "parallel", "arbitrary"),
            vmem_limit_bytes=32 * 1024 * 1024,
        ),
    )(q_aug, nf_aug, adj, gamma, beta)


def attention_light_ref(query, nodefea, input_adj, gamma, beta):
    """Pure-JAX reference of the PyTorch forward (for sanity checking)."""
    e_fea = query * nodefea
    cor_node = jnp.abs(jnp.sum(e_fea, axis=-1, keepdims=True))
    wei_fea = cor_node * nodefea
    num_nei = jnp.sum(input_adj, axis=-1, keepdims=True)
    fea_up = jnp.matmul(input_adj, wei_fea)
    fea_up = jnp.where(fea_up > 0, fea_up, 0.01 * fea_up)
    x = fea_up / (num_nei + 1e-8)
    mean = jnp.mean(x, axis=-1, keepdims=True)
    var = jnp.mean((x - mean) ** 2, axis=-1, keepdims=True)
    y = (x - mean) / jnp.sqrt(var + 1e-5)
    return y * gamma + beta


if __name__ == "__main__":
    B, N, D = 2, 16, 32   # batch, nodes, emb_dim

    key = jax.random.PRNGKey(0)
    kq, knf, kadj = jax.random.split(key, 3)
    query = jax.random.normal(kq, (B, N, D), dtype=jnp.float32)
    nodefea = jax.random.normal(knf, (B, N, D), dtype=jnp.float32)
    # binary adjacency with self-loops (deterministic)
    adj = (jax.random.uniform(kadj, (B, N, N)) > 0.5).astype(jnp.float32)
    eye = jnp.eye(N, dtype=jnp.float32)[None]
    input_adj = jnp.maximum(adj, eye)

    # nn.LayerNorm(emb_dim) default init: weight=1, bias=0
    gamma = jnp.ones((D,), dtype=jnp.float32)
    beta = jnp.zeros((D,), dtype=jnp.float32)

    out = attention_light(query, nodefea, input_adj, gamma, beta)
    jax.block_until_ready(out)

    ref = attention_light_ref(query, nodefea, input_adj, gamma, beta)
    assert out.shape == (B, N, D)
    assert jnp.allclose(out, ref, atol=1e-4, rtol=1e-4)

    print("KERNEL_OK")
</pallas_src>

<mosaic_0001>
module attributes {stable_mosaic.version = 11 : i64} {
  func.func @attention_light_kernel(%arg0: i32, %arg1: i32, %arg2: i32, %arg3: memref<1x16x33xf32, #tpu.memory_space<vmem>>, %arg4: memref<1x16x33xf32, #tpu.memory_space<vmem>>, %arg5: memref<1x16x16xbf16, #tpu.memory_space<vmem>>, %arg6: memref<1x32xf32, #tpu.memory_space<vmem>>, %arg7: memref<1x32xf32, #tpu.memory_space<vmem>>, %arg8: memref<1x16x32xf32, #tpu.memory_space<vmem>>, %arg9: memref<16x33xf32, #tpu.memory_space<vmem>>) attributes {dimension_semantics = [#tpu.dimension_semantics<parallel>, #tpu.dimension_semantics<parallel>, #tpu.dimension_semantics<arbitrary>], iteration_bounds = array<i64: 2, 1, 1>, scalar_prefetch = 0 : i64, scratch_operands = 1 : i64, tpu.core_type = #tpu.core_type<tc>, window_params = [{transform_indices = @transform_0, window_bounds = array<i64: 1, 16, 33>}, {transform_indices = @transform_1, window_bounds = array<i64: 1, 16, 33>}, {transform_indices = @transform_2, window_bounds = array<i64: 1, 16, 16>}, {pipeline_mode = #tpu.pipeline_mode<synchronous>, transform_indices = @transform_3, window_bounds = array<i64: 1, 32>}, {pipeline_mode = #tpu.pipeline_mode<synchronous>, transform_indices = @transform_4, window_bounds = array<i64: 1, 32>}, {transform_indices = @transform_5, window_bounds = array<i64: 1, 16, 32>}]} {
    %c0_i32 = arith.constant 0 : i32
    %0 = arith.cmpi eq, %arg2, %c0_i32 : i32
    %1 = arith.extui %0 : i1 to i32
    %c0_i32_0 = arith.constant 0 : i32
    %2 = arith.cmpi ne, %1, %c0_i32_0 : i32
    scf.if %2 {
      %cst_17 = arith.constant 0.000000e+00 : f32
      %28 = vector.broadcast %cst_17 : f32 to vector<16x33xf32>
      %c0_18 = arith.constant 0 : index
      %c0_19 = arith.constant 0 : index
      %29 = vector.load %arg9[%c0_18, %c0_19] : memref<16x33xf32, #tpu.memory_space<vmem>>, vector<16x33xf32>
      tpu.vector_store %arg9[%c0_18, %c0_19], %28 {strides = array<i32>} : memref<16x33xf32, #tpu.memory_space<vmem>>, vector<16x33xf32>,
    } else {
    }
    %c0 = arith.constant 0 : index
    %c0_1 = arith.constant 0 : index
    %c0_2 = arith.constant 0 : index
    %3 = vector.load %arg3[%c0, %c0_1, %c0_2] : memref<1x16x33xf32, #tpu.memory_space<vmem>>, vector<1x16x33xf32>
    %4 = vector.shape_cast %3 : vector<1x16x33xf32> to vector<16x33xf32>
    %c0_3 = arith.constant 0 : index
    %c0_4 = arith.constant 0 : index
    %c0_5 = arith.constant 0 : index
    %5 = vector.load %arg4[%c0_3, %c0_4, %c0_5] : memref<1x16x33xf32, #tpu.memory_space<vmem>>, vector<1x16x33xf32>
    %6 = vector.shape_cast %5 : vector<1x16x33xf32> to vector<16x33xf32>
    %c0_6 = arith.constant 0 : index
    %c0_7 = arith.constant 0 : index
    %c0_8 = arith.constant 0 : index
    %7 = vector.load %arg5[%c0_6, %c0_7, %c0_8] : memref<1x16x16xbf16, #tpu.memory_space<vmem>>, vector<1x16x16xbf16>
    %8 = vector.shape_cast %7 : vector<1x16x16xbf16> to vector<16x16xbf16>
    %9 = arith.extf %8 : vector<16x16xbf16> to vector<16x16xf32>
    %10 = arith.mulf %4, %6 : vector<16x33xf32>
    %cst = arith.constant dense<0.000000e+00> : vector<16xf32>
    %11 = vector.multi_reduction <add>, %10, %cst [1] : vector<16x33xf32> to vector<16xf32>
    %12 = vector.shape_cast %11 : vector<16xf32> to vector<16x1xf32>
    %13 = math.absf %12 : vector<16x1xf32>
    %14 = tpu.iota {dimensions = array<i32: 1>} : vector<16x33xi32>
    %c32_i32 = arith.constant 32 : i32
    %15 = vector.broadcast %c32_i32 : i32 to vector<16x33xi32>
    %16 = arith.cmpi eq, %14, %15 : vector<16x33xi32>
    %17 = vector.broadcast %13 : vector<16x1xf32> to vector<16x33xf32>
    %18 = arith.mulf %17, %6 : vector<16x33xf32>
    %cst_9 = arith.constant 1.000000e+00 : f32
    %19 = vector.broadcast %cst_9 : f32 to vector<16x33xf32>
    %20 = arith.select %16, %19, %18 : vector<16x33xi1>, vector<16x33xf32>
    %c0_10 = arith.constant 0 : index
    %c0_11 = arith.constant 0 : index
    %21 = vector.load %arg9[%c0_10, %c0_11] : memref<16x33xf32, #tpu.memory_space<vmem>>, vector<16x33xf32>
    %cst_12 = arith.constant dense<0.000000e+00> : vector<16x33xf32>
    %22 = tpu.matmul %9, %20, %cst_12 {dimension_numbers = #tpu.dot_dimension_numbers<[1], [0], [0], [1], [0, 0, 1, 1], [], []>} : vector<16x16xf32>, vector<16x33xf32>, vector<16x33xf32> -> vector<16x33xf32>
    %23 = arith.addf %21, %22 : vector<16x33xf32>
    %c0_13 = arith.constant 0 : index
    %c0_14 = arith.constant 0 : index
    %24 = vector.load %arg9[%c0_13, %c0_14] : memref<16x33xf32, #tpu.memory_space<vmem>>, vector<16x33xf32>
    tpu.vector_store %arg9[%c0_13, %c0_14], %23 {strides = array<i32>} : memref<16x33xf32, #tpu.memory_space<vmem>>, vector<16x33xf32>,
    %c0_i32_15 = arith.constant 0 : i32
    %25 = arith.cmpi eq, %arg2, %c0_i32_15 : i32
    %26 = arith.extui %25 : i1 to i32
    %c0_i32_16 = arith.constant 0 : i32
    %27 = arith.cmpi ne, %26, %c0_i32_16 : i32
    scf.if %27 {
      %c0_17 = arith.constant 0 : index
      %c0_18 = arith.constant 0 : index
      %28 = vector.load %arg9[%c0_17, %c0_18] : memref<16x33xf32, #tpu.memory_space<vmem>>, vector<16x33xf32>
      %29 = vector.extract_strided_slice %28 {offsets = [0, 0], sizes = [16, 32], strides = [1, 1]} : vector<16x33xf32> to vector<16x32xf32>
      %30 = vector.extract_strided_slice %28 {offsets = [0, 32], sizes = [16, 1], strides = [1, 1]} : vector<16x33xf32> to vector<16x1xf32>
      %cst_19 = arith.constant 0.000000e+00 : f32
      %31 = vector.broadcast %cst_19 : f32 to vector<16x32xf32>
      %32 = arith.cmpf ogt, %29, %31 : vector<16x32xf32>
      %cst_20 = arith.constant 0.00999999977 : f32
      %33 = vector.broadcast %cst_20 : f32 to vector<16x32xf32>
      %34 = arith.mulf %33, %29 : vector<16x32xf32>
      %35 = arith.select %32, %29, %34 : vector<16x32xi1>, vector<16x32xf32>
      %cst_21 = arith.constant 9.99999993E-9 : f32
      %36 = vector.broadcast %cst_21 : f32 to vector<16x1xf32>
      %37 = arith.addf %30, %36 : vector<16x1xf32>
      %38 = vector.broadcast %37 : vector<16x1xf32> to vector<16x32xf32>
      %39 = arith.divf %35, %38 : vector<16x32xf32>
      %cst_22 = arith.constant dense<0.000000e+00> : vector<16xf32>
      %40 = vector.multi_reduction <add>, %39, %cst_22 [1] : vector<16x32xf32> to vector<16xf32>
      %41 = vector.shape_cast %40 : vector<16xf32> to vector<16x1xf32>
      %cst_23 = arith.constant 3.200000e+01 : f32
      %42 = vector.broadcast %cst_23 : f32 to vector<16x1xf32>
      %43 = arith.divf %41, %42 : vector<16x1xf32>
      %44 = vector.broadcast %43 : vector<16x1xf32> to vector<16x32xf32>
      %45 = arith.subf %39, %44 : vector<16x32xf32>
      %46 = vector.broadcast %43 : vector<16x1xf32> to vector<16x32xf32>
      %47 = arith.subf %39, %46 : vector<16x32xf32>
      %48 = arith.mulf %45, %47 : vector<16x32xf32>
      %cst_24 = arith.constant dense<0.000000e+00> : vector<16xf32>
      %49 = vector.multi_reduction <add>, %48, %cst_24 [1] : vector<16x32xf32> to vector<16xf32>
      %50 = vector.shape_cast %49 : vector<16xf32> to vector<16x1xf32>
      %cst_25 = arith.constant 3.200000e+01 : f32
      %51 = vector.broadcast %cst_25 : f32 to vector<16x1xf32>
      %52 = arith.divf %50, %51 : vector<16x1xf32>
      %53 = vector.broadcast %43 : vector<16x1xf32> to vector<16x32xf32>
      %54 = arith.subf %39, %53 : vector<16x32xf32>
      %cst_26 = arith.constant 9.99999974E-6 : f32
      %55 = vector.broadcast %cst_26 : f32 to vector<16x1xf32>
      %56 = arith.addf %52, %55 : vector<16x1xf32>
      %57 = math.rsqrt %56 : vector<16x1xf32>
      %58 = vector.broadcast %57 : vector<16x1xf32> to vector<16x32xf32>
      %59 = arith.mulf %54, %58 : vector<16x32xf32>
      %c0_27 = arith.constant 0 : index
      %c0_28 = arith.constant 0 : index
      %60 = vector.load %arg6[%c0_27, %c0_28] : memref<1x32xf32, #tpu.memory_space<vmem>>, vector<1x32xf32>
      %61 = vector.broadcast %60 : vector<1x32xf32> to vector<16x32xf32>
      %62 = arith.mulf %59, %61 : vector<16x32xf32>
      %c0_29 = arith.constant 0 : index
      %c0_30 = arith.constant 0 : index
      %63 = vector.load %arg7[%c0_29, %c0_30] : memref<1x32xf32, #tpu.memory_space<vmem>>, vector<1x32xf32>
      %64 = vector.broadcast %63 : vector<1x32xf32> to vector<16x32xf32>
      %65 = arith.addf %62, %64 : vector<16x32xf32>
      %c0_31 = arith.constant 0 : index
      %c0_32 = arith.constant 0 : index
      %c0_33 = arith.constant 0 : index
      %66 = vector.load %arg8[%c0_31, %c0_32, %c0_33] : memref<1x16x32xf32, #tpu.memory_space<vmem>>, vector<1x16x32xf32>
      %67 = vector.shape_cast %66 : vector<1x16x32xf32> to vector<16x32xf32>
      %68 = vector.shape_cast %65 : vector<16x32xf32> to vector<1x16x32xf32>
      tpu.vector_store %arg8[%c0_31, %c0_32, %c0_33], %68 {strides = array<i32>} : memref<1x16x32xf32, #tpu.memory_space<vmem>>, vector<1x16x32xf32>,
    } else {
    }
    return
  }
  func.func @transform_0(%arg0: i32, %arg1: i32, %arg2: i32) -> (i32, i32, i32) {
    %c0_i32 = arith.constant 0 : i32
    %c0_i32_0 = arith.constant 0 : i32
    return %arg0, %arg2, %c0_i32 : i32, i32, i32
  }
  func.func @transform_1(%arg0: i32, %arg1: i32, %arg2: i32) -> (i32, i32, i32) {
    %c0_i32 = arith.constant 0 : i32
    %c0_i32_0 = arith.constant 0 : i32
    return %arg0, %arg2, %c0_i32 : i32, i32, i32
  }
  func.func @transform_2(%arg0: i32, %arg1: i32, %arg2: i32) -> (i32, i32, i32) {
    %c0_i32 = arith.constant 0 : i32
    return %arg0, %arg1, %arg2 : i32, i32, i32
  }
  func.func @transform_3(%arg0: i32, %arg1: i32, %arg2: i32) -> (i32, i32) {
    %c0_i32 = arith.constant 0 : i32
    %c0_i32_0 = arith.constant 0 : i32
    %c0_i32_1 = arith.constant 0 : i32
    return %c0_i32, %c0_i32_0 : i32, i32
  }
  func.func @transform_4(%arg0: i32, %arg1: i32, %arg2: i32) -> (i32, i32) {
    %c0_i32 = arith.constant 0 : i32
    %c0_i32_0 = arith.constant 0 : i32
    %c0_i32_1 = arith.constant 0 : i32
    return %c0_i32, %c0_i32_0 : i32, i32
  }
  func.func @transform_5(%arg0: i32, %arg1: i32, %arg2: i32) -> (i32, i32, i32) {
    %c0_i32 = arith.constant 0 : i32
    %c0_i32_0 = arith.constant 0 : i32
    return %arg0, %arg1, %c0_i32 : i32, i32, i32
  }
}

</mosaic_0001>

<llo_original>
// kernel: tpu_custom_call.1
$region0: #{tpu_custom_call.1}
  #allocation0 [shape = 'u32[]', space=smem, size = 0x4, offset = 0x4, fixed_abs, tag = 'smem constant byte address 0x4 - core index']
  #allocation1 [shape = 'u32[144,128]{1,0:T(1,128)}', space=vmem, size = 0x12000, scoped, tag = 'internal scratch']
  #allocation2 [shape = 'f32[16,33]{1,0:T(8,128)}', space=vmem, size = 0x2000, scoped, tag = 'scratch operand']
  %s0 = inlined_call_operand.hbm [shape: f32[2,16,33], index: 0, kind: input, shape index: {}]
  %s1 = inlined_call_operand.hbm [shape: f32[2,16,33], index: 1, kind: input, shape index: {}]
  %s2 = inlined_call_operand.hbm [shape: bf16[2,16,16], index: 2, kind: input, shape index: {}]
  %s3 = inlined_call_operand.vmem [shape: f32[1,32], index: 3, kind: input, shape index: {}]
  %s4 = inlined_call_operand.vmem [shape: f32[1,32], index: 4, kind: input, shape index: {}]
  %s5 = inlined_call_operand.hbm [shape: f32[2,16,32], index: 5, kind: output, shape index: {}]
  %s6 = sld [smem:[#allocation0]]
  $region73: #{tpu_custom_call.1} parent=0
    _
  %s8 = ssub.s32 1, %s6
  %s9 = scalar_select 0, %s8, %s6
  $region1: #{tpu_custom_call.1} parent=0
    #allocation3 [shape = 'u8[16384]{0}', space=vmem, size = 0x4000, scoped, tag = 'input window, operand 0']
    #allocation4 [shape = 's32[2]{0}', space=sflag, size = 0x8, scoped, tag = 'scoped memory for tpu_custom_call.1']
    #allocation5 [shape = 's32[2]{0}', space=sflag, size = 0x8, scoped, tag = 'scoped memory for tpu_custom_call.1']
    #allocation6 [shape = 'u8[16384]{0}', space=vmem, size = 0x4000, scoped, tag = 'input window, operand 1']
    #allocation7 [shape = 's32[2]{0}', space=sflag, size = 0x8, scoped, tag = 'scoped memory for tpu_custom_call.1']
    #allocation8 [shape = 'u8[8192]{0}', space=vmem, size = 0x2000, scoped, tag = 'input window, operand 2']
    #allocation9 [shape = 'u8[16384]{0}', space=vmem, size = 0x4000, scoped, tag = 'output window, operand 0']
    %10 = vsyncpa [#allocation4], 0
    %s11 = scalar_lea.sflag [#allocation4], 1
    %12 = vsyncpa %s11, 0
    %13 = vsyncpa [#allocation7], 0
    %s14 = scalar_lea.sflag [#allocation7], 1
    %15 = vsyncpa %s14, 0
    %16 = vsyncpa [#allocation5], 0
    %s17 = scalar_lea.sflag [#allocation5], 1
    %18 = vsyncpa %s17, 0
    loop: start=0, step=1, limit=4
    $region2: #{tpu_custom_call.1} parent=1 // loop_pre_header
      _
    $region3: #{tpu_custom_call.1} parent=1 // loop_header
      %s20 = sphi 0, %s24
      %p21 = scmp.ge.s32.totalorder %s20, 4
      %s27 = sphi 0, %s46
      %s28 = sphi 0, %s42
      %s29 = sphi 0, %s38
      %s30 = sphi 0, %s27
      %s31 = sphi 0, %s28
      %s32 = sphi 0, %s29
      %s33 = sphi 0, %s30
      %s34 = sphi 0, %s31
      %s35 = sphi 0, %s32
      %s51 = sphi 0, %s53
      %s54 = sphi 0, %s51
      %s55 = sphi 0, %s54
      %s71 = sphi 0, %s55
      %s79 = sphi 0, %s81
      %s82 = sphi 0, %s79
      %s83 = sphi 0, %s82
      %s99 = sphi 0, %s83
      %s109 = sphi 0, %s111
      %s112 = sphi 0, %s109
      %s113 = sphi 0, %s112
      %s129 = sphi 0, %s113
      %s133 = sphi 0, %s133
      %s135 = sphi 0, %s133
      %s136 = sphi 0, %s135
      %s150 = sphi 0, %s136
      %s154 = sphi 0, %s154
      %s156 = sphi 0, %s154
      %s157 = sphi 0, %s156
      %s171 = sphi 0, %s157
      %s179 = sphi 0, %s181
      %s182 = sphi 0, %s179
      %s183 = sphi 0, %s182
      %s199 = sphi 0, %s183
    $region4: #{tpu_custom_call.1} parent=1 // loop_header_branch
      %23 = sbr.rel (%p21) target = $region8
    $region5: #{tpu_custom_call.1} parent=1 // loop_body
      %s25 = ssub.s32 %s20, 1
      %s26 = ssub.s32 %s20, 2
      %s36 = sadd.s32 1, %s29
      %p37 = scmp.ge.s32.totalorder %s36, 1
      %s38 = scalar_select %p37, 0, %s36
      %s39 = sadd.s32 1, %s28
      %s40 = scalar_select %p37, %s39, %s28
      %p41 = scmp.ge.s32.totalorder %s40, 1
      %s42 = scalar_select %p41, 0, %s40
      %s43 = sadd.s32 1, %s27
      %s44 = scalar_select %p41, %s43, %s27
      %p45 = scmp.ge.s32.totalorder %s44, 2
      %s46 = scalar_select %p45, 0, %s44
      %s47 = ssub.s32 %s27, %s46
      %s48 = ssub.s32 %s29, %s38
      %s49 = sor.u32 %s47, %s48
      %p50 = scmp.eq.s32.totalorder %s49, 0
      %s52 = sadd.s32 %s51, 1
      %s53 = scalar_select %p50, %s51, %s52
      %p56 = pneg %p50
      %p57 = scmp.eq.s32.totalorder %s20, 1
      %p58 = por %p56, %p57
      %p59 = scmp.ne.s32.totalorder %s51, %s54
      %p60 = scmp.eq.s32.totalorder %s20, 0
      %p61 = por %p59, %p60
      %p62 = scmp.ne.s32.totalorder %s51, %s54
      %p63 = scmp.eq.s32.totalorder %s25, 1
      %p64 = por %p62, %p63
      %p65 = scmp.ne.s32.totalorder %s54, %s55
      %p66 = scmp.eq.s32.totalorder %s25, 0
      %p67 = por %p65, %p66
      %p68 = scmp.ne.s32.totalorder %s54, %s55
      %p69 = scmp.eq.s32.totalorder %s26, 1
      %p70 = por %p68, %p69
      %p72 = scmp.ne.s32.totalorder %s55, %s71
      %p73 = scmp.eq.s32.totalorder %s26, 0
      %p74 = por %p72, %p73
      %s75 = ssub.s32 %s27, %s46
      %s76 = ssub.s32 %s29, %s38
      %s77 = sor.u32 %s75, %s76
      %p78 = scmp.eq.s32.totalorder %s77, 0
      %s80 = sadd.s32 %s79, 1
      %s81 = scalar_select %p78, %s79, %s80
      %p84 = pneg %p78
      %p85 = scmp.eq.s32.totalorder %s20, 1
      %p86 = por %p84, %p85
      %p87 = scmp.ne.s32.totalorder %s79, %s82
      %p88 = scmp.eq.s32.totalorder %s20, 0
      %p89 = por %p87, %p88
      %p90 = scmp.ne.s32.totalorder %s79, %s82
      %p91 = scmp.eq.s32.totalorder %s25, 1
      %p92 = por %p90, %p91
      %p93 = scmp.ne.s32.totalorder %s82, %s83
      %p94 = scmp.eq.s32.totalorder %s25, 0
      %p95 = por %p93, %p94
      %p96 = scmp.ne.s32.totalorder %s82, %s83
      %p97 = scmp.eq.s32.totalorder %s26, 1
      %p98 = por %p96, %p97
      %p100 = scmp.ne.s32.totalorder %s83, %s99
      %p101 = scmp.eq.s32.totalorder %s26, 0
      %p102 = por %p100, %p101
      %s103 = ssub.s32 %s27, %s46
      %s104 = ssub.s32 %s28, %s42
      %s105 = sor.u32 %s103, %s104
      %s106 = ssub.s32 %s29, %s38
      %s107 = sor.u32 %s105, %s106
      %p108 = scmp.eq.s32.totalorder %s107, 0
      %s110 = sadd.s32 %s109, 1
      %s111 = scalar_select %p108, %s109, %s110
      %p114 = pneg %p108
      %p115 = scmp.eq.s32.totalorder %s20, 1
      %p116 = por %p114, %p115
      %p117 = scmp.ne.s32.totalorder %s109, %s112
      %p118 = scmp.eq.s32.totalorder %s20, 0
      %p119 = por %p117, %p118
      %p120 = scmp.ne.s32.totalorder %s109, %s112
      %p121 = scmp.eq.s32.totalorder %s25, 1
      %p122 = por %p120, %p121
      %p123 = scmp.ne.s32.totalorder %s112, %s113
      %p124 = scmp.eq.s32.totalorder %s25, 0
      %p125 = por %p123, %p124
      %p126 = scmp.ne.s32.totalorder %s112, %s113
      %p127 = scmp.eq.s32.totalorder %s26, 1
      %p128 = por %p126, %p127
      %p130 = scmp.ne.s32.totalorder %s113, %s129
      %p131 = scmp.eq.s32.totalorder %s26, 0
      %p132 = por %p130, %p131
      %s134 = sadd.s32 %s133, 1
      %p137 = scmp.eq.s32.totalorder %s20, 1
      %p138 = scmp.ne.s32.totalorder %s133, %s135
      %p139 = scmp.eq.s32.totalorder %s20, 0
      %p140 = por %p138, %p139
      %p141 = scmp.ne.s32.totalorder %s133, %s135
      %p142 = scmp.eq.s32.totalorder %s25, 1
      %p143 = por %p141, %p142
      %p144 = scmp.ne.s32.totalorder %s135, %s136
      %p145 = scmp.eq.s32.totalorder %s25, 0
      %p146 = por %p144, %p145
      %p147 = scmp.ne.s32.totalorder %s135, %s136
      %p148 = scmp.eq.s32.totalorder %s26, 1
      %p149 = por %p147, %p148
      %p151 = scmp.ne.s32.totalorder %s136, %s150
      %p152 = scmp.eq.s32.totalorder %s26, 0
      %p153 = por %p151, %p152
      %s155 = sadd.s32 %s154, 1
      %p158 = scmp.eq.s32.totalorder %s20, 1
      %p159 = scmp.ne.s32.totalorder %s154, %s156
      %p160 = scmp.eq.s32.totalorder %s20, 0
      %p161 = por %p159, %p160
      %p162 = scmp.ne.s32.totalorder %s154, %s156
      %p163 = scmp.eq.s32.totalorder %s25, 1
      %p164 = por %p162, %p163
      %p165 = scmp.ne.s32.totalorder %s156, %s157
      %p166 = scmp.eq.s32.totalorder %s25, 0
      %p167 = por %p165, %p166
      %p168 = scmp.ne.s32.totalorder %s156, %s157
      %p169 = scmp.eq.s32.totalorder %s26, 1
      %p170 = por %p168, %p169
      %p172 = scmp.ne.s32.totalorder %s157, %s171
      %p173 = scmp.eq.s32.totalorder %s26, 0
      %p174 = por %p172, %p173
      %s175 = ssub.s32 %s27, %s46
      %s176 = ssub.s32 %s28, %s42
      %s177 = sor.u32 %s175, %s176
      %p178 = scmp.eq.s32.totalorder %s177, 0
      %s180 = sadd.s32 %s179, 1
      %s181 = scalar_select %p178, %s179, %s180
      %p184 = pneg %p178
      %p185 = scmp.eq.s32.totalorder %s20, 1
      %p186 = por %p184, %p185
      %p187 = scmp.ne.s32.totalorder %s179, %s182
      %p188 = scmp.eq.s32.totalorder %s20, 0
      %p189 = por %p187, %p188
      %p190 = scmp.ne.s32.totalorder %s179, %s182
      %p191 = scmp.eq.s32.totalorder %s25, 1
      %p192 = por %p190, %p191
      %p193 = scmp.ne.s32.totalorder %s182, %s183
      %p194 = scmp.eq.s32.totalorder %s25, 0
      %p195 = por %p193, %p194
      %p196 = scmp.ne.s32.totalorder %s182, %s183
      %p197 = scmp.eq.s32.totalorder %s26, 1
      %p198 = por %p196, %p197
      %p200 = scmp.ne.s32.totalorder %s183, %s199
      %p201 = scmp.eq.s32.totalorder %s26, 0
      %p202 = por %p200, %p201
      %p203 = scmp.le.s32.totalorder 1, %s20
      %p204 = scmp.lt.s32.totalorder %s20, 3
      %p205 = pnand %p203, %p204
      %p206 = pneg %p205
      // Predicated region
      $region9: #{tpu_custom_call.1} parent=5 // pred_check
        _
      $region10: #{tpu_custom_call.1} parent=5 // pred_check_branch
        %208 = sbr.rel (%p205) target = $region12
      $region11: #{tpu_custom_call.1} parent=5 // pred_region
        %s209 = ssub.s32 %s20, 1
        // Predicated region
        $region13: #{tpu_custom_call.1} parent=11 // pred_check
          %p210 = pneg %p146
        $region14: #{tpu_custom_call.1} parent=11 // pred_check_branch
          %212 = sbr.rel (%p210) target = $region16
        $region15: #{tpu_custom_call.1} parent=11 // pred_region
          _
        $region16: #{tpu_custom_call.1} parent=11 // pred_fallthru
          _
        // Predicated region
        $region17: #{tpu_custom_call.1} parent=11 // pred_check
          %p213 = pneg %p167
        $region18: #{tpu_custom_call.1} parent=11 // pred_check_branch
          %215 = sbr.rel (%p213) target = $region20
        $region19: #{tpu_custom_call.1} parent=11 // pred_region
          _
        $region20: #{tpu_custom_call.1} parent=11 // pred_fallthru
          _
      $region12: #{tpu_custom_call.1} parent=5 // pred_fallthru
        _
      %p216 = scmp.lt.s32.totalorder %s20, 2
      // Predicated region
      $region21: #{tpu_custom_call.1} parent=5 // pred_check
        %p217 = pneg %p216
      $region22: #{tpu_custom_call.1} parent=5 // pred_check_branch
        %219 = sbr.rel (%p217) target = $region24
      $region23: #{tpu_custom_call.1} parent=5 // pred_region
        // Predicated region
        $region25: #{tpu_custom_call.1} parent=23 // pred_check
          %p220 = pneg %p61
        $region26: #{tpu_custom_call.1} parent=23 // pred_check_branch
          %222 = sbr.rel (%p220) target = $region28
        $region27: #{tpu_custom_call.1} parent=23 // pred_region
          %s223 = sand.u32 %s51, 1
          %s224 = scalar_lea.sflag [#allocation4], %s223
          %s225 = sand.u32 %s51, 1
          %s226 = smul.addr %s225, 16
          %s227 = scalar_lea.vmem [#allocation3], %s226
          %s228 = smul.u32 2, %s29
          %s230 = ssub.s32 256, 256
          %231 = vsyncadd %s224, %s230
          %s232 = smul.addr %s27, 2
          %s233 = sadd.s32 %s228, %s232
          %s234 = smul.addr %s233, 128
          %s235 = scalar_lea.hbm %s0, %s234
          %s236 = sshll.u32 %s227, 4
          %s237 = int_to_ptr.vmem [resolvable:$true] %s236
          %242 = dma.hbm_to_vmem [thread:$0]  %s235, 256, %s237, %s224, 128, 128, 8
        $region28: #{tpu_custom_call.1} parent=23 // pred_fallthru
          _
        // Predicated region
        $region29: #{tpu_custom_call.1} parent=23 // pred_check
          %p243 = pneg %p89
        $region30: #{tpu_custom_call.1} parent=23 // pred_check_branch
          %245 = sbr.rel (%p243) target = $region32
        $region31: #{tpu_custom_call.1} parent=23 // pred_region
          %s246 = sand.u32 %s20, 1
          %s247 = scalar_lea.sflag [#allocation7], %s246
          %s248 = sand.u32 %s79, 1
          %s249 = smul.addr %s248, 16
          %s250 = scalar_lea.vmem [#allocation6], %s249
          %s251 = smul.u32 2, %s29
          %s253 = ssub.s32 256, 256
          %254 = vsyncadd %s247, %s253
          %s255 = smul.addr %s27, 2
          %s256 = sadd.s32 %s251, %s255
          %s257 = smul.addr %s256, 128
          %s258 = scalar_lea.hbm %s1, %s257
          %s259 = sshll.u32 %s250, 4
          %s260 = int_to_ptr.vmem [resolvable:$true] %s259
          %265 = dma.hbm_to_vmem [thread:$0]  %s258, 256, %s260, %s247, 128, 128, 8
        $region32: #{tpu_custom_call.1} parent=23 // pred_fallthru
          _
        // Predicated region
        $region33: #{tpu_custom_call.1} parent=23 // pred_check
          %p266 = pneg %p119
        $region34: #{tpu_custom_call.1} parent=23 // pred_check_branch
          %268 = sbr.rel (%p266) target = $region36
        $region35: #{tpu_custom_call.1} parent=23 // pred_region
          %s269 = sand.u32 %s20, 1
          %s270 = scalar_lea.sflag [#allocation7], %s269
          %s271 = sand.u32 %s109, 1
          %s272 = smul.addr %s271, 8
          %s273 = scalar_lea.vmem [#allocation8], %s272
          %s274 = smul.u32 2, %s28
          %s276 = ssub.s32 128, 128
          %277 = vsyncadd %s270, %s276
          %s278 = sadd.s32 %s29, %s274
          %s279 = smul.addr %s27, 2
          %s280 = sadd.s32 %s278, %s279
          %s281 = smul.addr %s280, 64
          %s282 = scalar_lea.hbm %s2, %s281
          %s283 = sshll.u32 %s273, 4
          %s284 = int_to_ptr.vmem [resolvable:$true] %s283
          %289 = dma.hbm_to_vmem [thread:$0]  %s282, 128, %s284, %s270, 64, 64, 4
        $region36: #{tpu_custom_call.1} parent=23 // pred_fallthru
          _
      $region24: #{tpu_custom_call.1} parent=5 // pred_fallthru
        _
      %p290 = scmp.le.s32.totalorder 1, %s20
      %p291 = scmp.lt.s32.totalorder %s20, 3
      %p292 = pnand %p290, %p291
      %p293 = pneg %p292
      // Predicated region
      $region37: #{tpu_custom_call.1} parent=5 // pred_check
        _
      $region38: #{tpu_custom_call.1} parent=5 // pred_check_branch
        %295 = sbr.rel (%p292) target = $region40
      $region39: #{tpu_custom_call.1} parent=5 // pred_region
        %s296 = ssub.s32 %s20, 1
        %s297 = sand.u32 %s54, 1
        %s298 = scalar_lea.sflag [#allocation4], %s297
        %s299 = sand.u32 %s54, 1
        %s300 = smul.addr %s299, 16
        %s301 = scalar_lea.vmem [#allocation3], %s300
        // Predicated region
        $region41: #{tpu_custom_call.1} parent=39 // pred_check
          %p302 = pneg %p67
        $region42: #{tpu_custom_call.1} parent=39 // pred_check_branch
          %304 = sbr.rel (%p302) target = $region44
        $region43: #{tpu_custom_call.1} parent=39 // pred_region
          %305 = dma.done %s298, 256
        $region44: #{tpu_custom_call.1} parent=39 // pred_fallthru
          _
        %s306 = sand.u32 %s25, 1
        %s307 = scalar_lea.sflag [#allocation7], %s306
        %s308 = sand.u32 %s82, 1
        %s309 = smul.addr %s308, 16
        %s310 = scalar_lea.vmem [#allocation6], %s309
        // Predicated region
        $region45: #{tpu_custom_call.1} parent=39 // pred_check
          %p311 = pneg %p95
        $region46: #{tpu_custom_call.1} parent=39 // pred_check_branch
          %313 = sbr.rel (%p311) target = $region48
        $region47: #{tpu_custom_call.1} parent=39 // pred_region
          %314 = dma.done %s307, 256
        $region48: #{tpu_custom_call.1} parent=39 // pred_fallthru
          _
        %s315 = sand.u32 %s25, 1
        %s316 = scalar_lea.sflag [#allocation7], %s315
        %s317 = sand.u32 %s112, 1
        %s318 = smul.addr %s317, 8
        %s319 = scalar_lea.vmem [#allocation8], %s318
        // Predicated region
        $region49: #{tpu_custom_call.1} parent=39 // pred_check
          %p320 = pneg %p125
        $region50: #{tpu_custom_call.1} parent=39 // pred_check_branch
          %322 = sbr.rel (%p320) target = $region52
        $region51: #{tpu_custom_call.1} parent=39 // pred_region
          %323 = dma.done %s316, 128
        $region52: #{tpu_custom_call.1} parent=39 // pred_fallthru
          _
        %s324 = sand.u32 %s54, 1
        %s325 = scalar_lea.sflag [#allocation4], %s324
        %s326 = sand.u32 %s54, 1
        %s327 = smul.addr %s326, 16
        %s328 = scalar_lea.vmem [#allocation3], %s327
        %p329 = pneg %p67
        %p330 = pneg %p64
        %s331 = sand.u32 %s25, 1
        %s332 = scalar_lea.sflag [#allocation7], %s331
        %s333 = sand.u32 %s82, 1
        %s334 = smul.addr %s333, 16
        %s335 = scalar_lea.vmem [#allocation6], %s334
        %p336 = pneg %p95
        %p337 = pneg %p92
        %s338 = sand.u32 %s25, 1
        %s339 = scalar_lea.sflag [#allocation7], %s338
        %s340 = sand.u32 %s112, 1
        %s341 = smul.addr %s340, 8
        %s342 = scalar_lea.vmem [#allocation8], %s341
        %p343 = pneg %p125
        %p344 = pneg %p122
        %p345 = pneg %p146
        %p346 = pneg %p143
        %p347 = pneg %p167
        %p348 = pneg %p164
        %p349 = pneg %p195
        %p350 = pneg %p192
        %s351 = sand.u32 %s182, 1
        %s352 = scalar_lea.sflag [#allocation5], %s351
        %s353 = sand.u32 %s182, 1
        %s354 = smul.addr %s353, 16
        %s355 = scalar_lea.vmem [#allocation9], %s354
        %s356 = smul.u32 2, %s32
        %s357 = smul.u32 2, %s32
        %s358 = smul.u32 2, %s31
        %s359 = smul.u32 2, %s31
        %p360 = scmp.eq.s32.totalorder %s32, 0
        // Predicated region
        $region53: #{tpu_custom_call.1} parent=39 // pred_check
          %p361 = pneg %p360
        $region54: #{tpu_custom_call.1} parent=39 // pred_check_branch
          %363 = sbr.rel (%p361) target = $region56
        $region55: #{tpu_custom_call.1} parent=39 // pred_region
          %vm364 = vcmask 269312
          %365 = vst.msk [vmem:[#allocation2] sm:$0xff] %vm364, 0.0
          %366 = vst.msk [vmem:[#allocation2 + $0x8] sm:$0xff] %vm364, 0.0
        $region56: #{tpu_custom_call.1} parent=39 // pred_fallthru
          _
        %v367 = vld [vmem:[%s301] sm:$0xff]
        %v368 = vld [vmem:[%s301 + $0x8] sm:$0xff]
        %v369 = vld [vmem:[%s310] sm:$0xff]
        %v370 = vld [vmem:[%s310 + $0x8] sm:$0xff]
        %v371 = vld [vmem:[%s319] sm:$0xf]
        %v372 = vld [vmem:[%s319 + $0x4] sm:$0xf]
        %v373 = vunpack.c.l.bf16 %v371
        %v374 = vunpack.c.l.bf16 %v372
        %v375 = vmul.f32 %v367, %v369
        %v376 = vmul.f32 %v368, %v370
        %vm377 = vcmask 269312
        %v378 = vsel %vm377, %v375, 0.0
        %379 = vadd.xlane.f32.xlu0 %v378
        %v380 = vpop.xlane.xlu0 %379
        %v381 = vsel %vm377, %v376, 0.0
        %382 = vadd.xlane.f32.xlu0 %v381
        %v383 = vpop.xlane.xlu0 %382
        %v384 = vand.u32 2147483647, %v380
        %v385 = vand.u32 2147483647, %v383
        %v386 = vlaneseq
        %v387 = vand.u32 %v386, 127
        %vm388 = vcmp.eq.s32.totalorder %v387, 32
        %v389 = vmul.f32 %v384, %v369
        %v390 = vmul.f32 %v385, %v370
        %v391 = vsel %vm388, 1.0, %v389
        %v392 = vsel %vm388, 1.0, %v390
        %v393 = vld [vmem:[#allocation2] sm:$0xff]
        %v394 = vld [vmem:[#allocation2 + $0x8] sm:$0xff]
        %vm395 = vcmask 130048
        %v397 = vsel %vm395, %v373, 0
        %v400 = vsel %vm395, %v374, 0
        %402 = vmatprep.subr.mxu0 0.0
        %403 = vmatpush1.msra.mxu0 %v391
        %404 = vmatprep.subr.mxu0 0.0
        %405 = vmatpush1.msra.mxu0 %v392
        %406 = vmatprep.subr.mxu0 0.0
        %407 = vmatpush1.msra.mxu0 0.0
        %408 = vmatprep.subr.mxu0 0.0
        %409 = vmatpush1.msra.mxu0 0.0
        %410 = vmatprep.subr.mxu0 0.0
        %411 = vmatpush1.msra.mxu0 0.0
        %412 = vmatprep.subr.mxu0 0.0
        %413 = vmatpush1.msra.mxu0 0.0
        %414 = vmatprep.subr.mxu0 0.0
        %415 = vmatpush1.msra.mxu0 0.0
        %416 = vmatprep.subr.mxu0 0.0
        %417 = vmatpush1.msra.mxu0 0.0
        %418 = vmatprep.subr.mxu0 0.0
        %419 = vmatpush1.msra.mxu0 0.0
        %420 = vmatprep.subr.mxu0 0.0
        %421 = vmatpush1.msra.mxu0 0.0
        %422 = vmatprep.subr.mxu0 0.0
        %423 = vmatpush1.msra.mxu0 0.0
        %424 = vmatprep.subr.mxu0 0.0
        %425 = vmatpush1.msra.mxu0 0.0
        %426 = vmatprep.subr.mxu0 0.0
        %427 = vmatpush1.msra.mxu0 0.0
        %428 = vmatprep.subr.mxu0 0.0
        %429 = vmatpush1.msra.mxu0 0.0
        %430 = vmatprep.subr.mxu0 0.0
        %431 = vmatpush1.msra.mxu0 0.0
        %432 = vmatprep.subr.mxu0 0.0
        %433 = vmatpush1.msra.mxu0 0.0
        %434 = vmatprep.subr.mxu0 0.0
        %435 = vmatpush1.msra.mxu0 0.0
        %436 = vmatprep.subr.mxu0 0.0
        %437 = vmatpush1.msra.mxu0 0.0
        %438 = vmatprep.subr.mxu0 0.0
        %439 = vmatpush1.msra.mxu0 0.0
        %440 = vmatprep.subr.mxu0 0.0
        %441 = vmatpush1.msra.mxu0 0.0
        %442 = vmatprep.subr.mxu0 0.0
        %443 = vmatpush1.msra.mxu0 0.0
        %444 = vmatprep.subr.mxu0 0.0
        %445 = vmatpush1.msra.mxu0 0.0
        %446 = vmatprep.subr.mxu0 0.0
        %447 = vmatpush1.msra.mxu0 0.0
        %448 = vmatprep.subr.mxu0 0.0
        %449 = vmatpush1.msra.mxu0 0.0
        %450 = vmatprep.subr.mxu0 0.0
        %451 = vmatpush1.msra.mxu0 0.0
        %452 = vmatprep.subr.mxu0 0.0
        %453 = vmatpush1.msra.mxu0 0.0
        %454 = vmatprep.subr.mxu0 0.0
        %455 = vmatpush1.msra.mxu0 0.0
        %456 = vmatprep.subr.mxu0 0.0
        %457 = vmatpush1.msra.mxu0 0.0
        %458 = vmatprep.subr.mxu0 0.0
        %459 = vmatpush1.msra.mxu0 0.0
        %460 = vmatprep.subr.mxu0 0.0
        %461 = vmatpush1.msra.mxu0 0.0
        %462 = vmatprep.subr.mxu0 0.0
        %463 = vmatpush1.msra.mxu0 0.0
        %464 = vmatprep.subr.mxu0 0.0
        %465 = vmatpush1.msra.mxu0 0.0
        %466 = vmatprep.mubr.f32.mxu0 0.0
        %467 = vmatmul.mubr.f32.gmra.mrb[0].mxu0 %v397
        %v468 = vpop.f32.mrb[0].mxu0
        %v469 = vadd.f32 0.0, %v468
        %v470 = vpop.f32.mrb[0].mxu0
        %471 = vmatprep.mubr.f32.mxu0 0.0
        %472 = vmatmul.mubr.f32.gmra.mrb[0].mxu0 %v400
        %v473 = vpop.f32.mrb[0].mxu0
        %v474 = vadd.f32 0.0, %v473
        %v475 = vpop.f32.mrb[0].mxu0
        %476 = vdwg.mxu0
        %v477 = vadd.f32 %v393, %v469
        %v478 = vadd.f32 %v394, %v474
        %479 = vst.msk [vmem:[#allocation2] sm:$0xff] %vm377, %v477
        %480 = vst.msk [vmem:[#allocation2 + $0x8] sm:$0xff] %vm377, %v478
        // Predicated region
        $region57: #{tpu_custom_call.1} parent=39 // pred_check
          %p481 = pneg %p360
        $region58: #{tpu_custom_call.1} parent=39 // pred_check_branch
          %483 = sbr.rel (%p481) target = $region60
        $region59: #{tpu_custom_call.1} parent=39 // pred_region
          %v484 = vld [vmem:[#allocation2] sm:$0xff]
          %v485 = vld [vmem:[#allocation2 + $0x8] sm:$0xff]
          %vm486 = vcmp.gt.f32.partialorder %v484, 0.0
          %vm487 = vcmp.gt.f32.partialorder %v485, 0.0
          %v488 = vmul.f32 %v484, 0.01
          %v489 = vmul.f32 %v485, 0.01
          %v490 = vsel %vm486, %v484, %v488
          %v491 = vsel %vm487, %v485, %v489
          %v492 = vadd.f32 %v484, 1e-08
          %v493 = vadd.f32 %v485, 1e-08
          %495 = vset.pattern.permute.xlu0 32
          %496 = vperm.xlu0 %495, %v492
          %v497 = vpop.permute.xlu0 %496
          %500 = vset.pattern.permute.xlu0 32
          %501 = vperm.xlu0 %500, %v493
          %v502 = vpop.permute.xlu0 %501
          %v504 = vrcp.pop %v497
          %v505 = vmul.f32 %v490, %v504
          %v506 = vrcp.pop %v502
          %v507 = vmul.f32 %v491, %v506
          %vm508 = vcmask 261120
          %v509 = vsel %vm508, %v505, 0.0
          %510 = vadd.xlane.f32.xlu0 %v509
          %v511 = vpop.xlane.xlu0 %510
          %v512 = vsel %vm508, %v507, 0.0
          %513 = vadd.xlane.f32.xlu0 %v512
          %v514 = vpop.xlane.xlu0 %513
          %v515 = vrcp.pop 32.0
          %v516 = vmul.f32 %v511, %v515
          %v517 = vmul.f32 %v514, %v515
          %v518 = vsub.f32 %v505, %v516
          %v519 = vsub.f32 %v507, %v517
          %v520 = vmul.f32 %v518, %v518
          %v521 = vmul.f32 %v519, %v519
          %v522 = vsel %vm508, %v520, 0.0
          %523 = vadd.xlane.f32.xlu0 %v522
          %v524 = vpop.xlane.xlu0 %523
          %v525 = vsel %vm508, %v521, 0.0
          %526 = vadd.xlane.f32.xlu0 %v525
          %v527 = vpop.xlane.xlu0 %526
          %v528 = vmul.f32 %v524, %v515
          %v529 = vmul.f32 %v527, %v515
          %v530 = vadd.f32 %v528, 1e-05
          %v531 = vadd.f32 %v529, 1e-05
          %v532 = vrsqrt.pop %v530
          %v533 = vrsqrt.pop %v531
          %v534 = vmul.f32 %v518, %v532
          %v535 = vmul.f32 %v519, %v533
          %v536 = vld [vmem:[%s3] sm:$0x1]
          %v538 = vlaneseq
          %v539 = vshrl.u32 %v538, 7
          %v540 = vsub.s32 0, %v539
          %v541 = vrot.slane %v536, %v540
          %v543 = vmul.f32 %v534, %v541
          %v544 = vmul.f32 %v535, %v541
          %v545 = vld [vmem:[%s4] sm:$0x1]
          %v547 = vlaneseq
          %v548 = vshrl.u32 %v547, 7
          %v549 = vsub.s32 0, %v548
          %v550 = vrot.slane %v545, %v549
          %v552 = vadd.f32 %v543, %v550
          %v553 = vadd.f32 %v544, %v550
          %554 = vst.msk [vmem:[%s355] sm:$0xff] %vm508, %v552
          %555 = vst.msk [vmem:[%s355 + $0x8] sm:$0xff] %vm508, %v553
        $region60: #{tpu_custom_call.1} parent=39 // pred_fallthru
          _
        %s556 = sand.u32 %s182, 1
        %s557 = scalar_lea.sflag [#allocation5], %s556
        %s558 = sand.u32 %s182, 1
        %s559 = smul.addr %s558, 16
        %s560 = scalar_lea.vmem [#allocation9], %s559
        // Predicated region
        $region61: #{tpu_custom_call.1} parent=39 // pred_check
          %p561 = pneg %p192
        $region62: #{tpu_custom_call.1} parent=39 // pred_check_branch
          %563 = sbr.rel (%p561) target = $region64
        $region63: #{tpu_custom_call.1} parent=39 // pred_region
          %s564 = smul.u32 2, %s31
          %s566 = ssub.s32 256, 256
          %567 = vsyncadd %s557, %s566
          %s568 = smul.addr %s30, 2
          %s569 = sadd.s32 %s564, %s568
          %s570 = smul.addr %s569, 128
          %s571 = scalar_lea.hbm %s5, %s570
          %s572 = sshll.u32 %s560, 4
          %s573 = int_to_ptr.vmem [resolvable:$true] %s572
          %578 = dma.vmem_to_hbm [thread:$0]  %s573, 256, %s571, %s557, 128, 128, 8
        $region64: #{tpu_custom_call.1} parent=39 // pred_fallthru
          _
      $region40: #{tpu_custom_call.1} parent=5 // pred_fallthru
        _
      %p579 = scmp.le.s32.totalorder 2, %s20
      // Predicated region
      $region65: #{tpu_custom_call.1} parent=5 // pred_check
        %p580 = pneg %p579
      $region66: #{tpu_custom_call.1} parent=5 // pred_check_branch
        %582 = sbr.rel (%p580) target = $region68
      $region67: #{tpu_custom_call.1} parent=5 // pred_region
        %s583 = ssub.s32 %s20, 2
        // Predicated region
        $region69: #{tpu_custom_call.1} parent=67 // pred_check
          %p584 = pneg %p198
        $region70: #{tpu_custom_call.1} parent=67 // pred_check_branch
          %586 = sbr.rel (%p584) target = $region72
        $region71: #{tpu_custom_call.1} parent=67 // pred_region
          %s587 = sand.u32 %s183, 1
          %s588 = scalar_lea.sflag [#allocation5], %s587
          %s589 = sand.u32 %s183, 1
          %s590 = smul.addr %s589, 16
          %s591 = scalar_lea.vmem [#allocation9], %s590
          %592 = dma.done %s588, 256
        $region72: #{tpu_custom_call.1} parent=67 // pred_fallthru
          _
      $region68: #{tpu_custom_call.1} parent=5 // pred_fallthru
        _
    $region6: #{tpu_custom_call.1} parent=1 // loop_footer
      %s24 = sadd.s32 1, %s20
    $region7: #{tpu_custom_call.1} parent=1 // loop_footer_branch
      %19 = sbr.rel target = $region3
    $region8: #{tpu_custom_call.1} parent=1 // loop_exit
      _
    %593 = vsyncpa [#allocation4], 1
    %s594 = scalar_lea.sflag [#allocation4], 1
    %595 = vsyncpa %s594, 1
    %596 = vsyncpa [#allocation7], 1
    %s597 = scalar_lea.sflag [#allocation7], 1
    %598 = vsyncpa %s597, 1
    %599 = vsyncpa [#allocation5], 1
    %s600 = scalar_lea.sflag [#allocation5], 1
    %601 = vsyncpa %s600, 1

</llo_original>
